<compile_context>
chip_gen: v6e
topology: v6e:2x2x1
jax: 0.10.0
libtpu: 0.0.40
codegen_flags: <defaults>
</compile_context>

<pallas_src>
import functools

import jax
import jax.numpy as jnp
import numpy as np
from jax.experimental import pallas as pl
from jax.experimental.pallas import tpu as pltpu

_LANE = 128     # vreg lane width (minor axis)
_SUBLANE = 8    # vreg sublane count (second-minor axis)


def _round_up(a, b):
    return ((a + b - 1) // b) * b


def _mlp_kernel(*refs, num_layers):
    # refs = (x_ref, w0, b0, w1, b1, ..., w_{L-1}, b_{L-1}, out_ref)
    #   x_ref   : (tile_m, d0_pad)      VMEM tile of input rows
    #   w_l     : (dl_pad, dl1_pad)     VMEM-resident pre-transposed weight
    #   b_l     : (1, dl1_pad)          VMEM-resident bias row
    #   out_ref : (tile_m, dL_pad)
    x_ref = refs[0]
    out_ref = refs[-1]
    params = refs[1:-1]

    h = x_ref[...]
    for l in range(num_layers):
        w = params[2 * l][...]
        b = params[2 * l + 1][...]
        # MXU matmul with f32 accumulation; bias / ReLU are VPU epilogue.
        h = jnp.dot(h, w, preferred_element_type=jnp.float32) + b
        if l < num_layers - 1:
            h = jnp.maximum(h, 0.0)
    out_ref[...] = h.astype(out_ref.dtype)


@jax.jit
def mlp_forward(x, weights, biases):
    """Fused MLP forward.

    x        : (..., in_dim)                      (any leading batch dims)
    weights  : list of PyTorch-layout Linear weights, each (out_f, in_f)
    biases   : list of biases, each (out_f,)
    Returns  : (..., out_dim)
    """
    weights = list(weights)
    biases = list(biases)
    num_layers = len(weights)
    assert num_layers >= 1 and len(biases) == num_layers

    orig_dtype = x.dtype
    lead_shape = x.shape[:-1]
    in_dim = x.shape[-1]
    out_dim = weights[-1].shape[0]

    # Per-layer feature dims and their lane-padded (multiple-of-128) versions.
    dims = [in_dim] + [w.shape[0] for w in weights]
    pdims = [_round_up(d, _LANE) for d in dims]

    # Flatten all leading dims into one row axis; rows are the grid/tile axis.
    x2 = x.reshape(-1, in_dim).astype(jnp.float32)
    M = x2.shape[0]

    # Row-tile size: big tiles amortize the ~0.35us/step overhead; pad M so the
    # grid divides evenly (padded rows are dropped after the kernel).
    if M >= 512:
        tile_m = 256
    else:
        tile_m = max(_SUBLANE, _round_up(M, _SUBLANE))
    M_pad = _round_up(M, tile_m)

    pad_rows = M_pad - M
    pad_cols = pdims[0] - in_dim
    if pad_rows or pad_cols:
        x2 = jnp.pad(x2, ((0, pad_rows), (0, pad_cols)))

    # PyTorch Linear stores W as (out, in); transpose once here to (in, out) so
    # the kernel does a lane-dense x @ W on the MXU, and zero-pad both feature
    # axes up to 128-multiples (padding is inert: zero weight rows/cols + zero
    # bias entries keep padded lanes at exactly zero through every ReLU).
    params = []
    for l, (w, b) in enumerate(zip(weights, biases)):
        wt = jnp.transpose(w).astype(jnp.float32)          # (d_in, d_out)
        d_in, d_out = wt.shape
        wt = jnp.pad(wt, ((0, pdims[l] - d_in), (0, pdims[l + 1] - d_out)))
        bp = jnp.pad(b.astype(jnp.float32), (0, pdims[l + 1] - d_out))
        params.append(wt)
        params.append(bp.reshape(1, -1))

    grid = (M_pad // tile_m,)

    in_specs = [pl.BlockSpec((tile_m, pdims[0]), lambda i: (i, 0))]
    for p in params:
        # Constant index_map -> parameter block stays resident in VMEM.
        in_specs.append(pl.BlockSpec(p.shape, lambda i: (0, 0)))

    # Advisory cost estimate for the XLA scheduler.
    flops = 2 * M_pad * sum(pdims[l] * pdims[l + 1] for l in range(num_layers))
    bytes_accessed = 4 * (
        M_pad * pdims[0]
        + sum(int(np.prod(p.shape)) for p in params)
        + M_pad * pdims[-1]
    )
    cost = pl.CostEstimate(flops=flops, transcendentals=0,
                           bytes_accessed=bytes_accessed)

    out = pl.pallas_call(
        functools.partial(_mlp_kernel, num_layers=num_layers),
        out_shape=jax.ShapeDtypeStruct((M_pad, pdims[-1]), jnp.float32),
        grid=grid,
        in_specs=in_specs,
        out_specs=pl.BlockSpec((tile_m, pdims[-1]), lambda i: (i, 0)),
        compiler_params=pltpu.CompilerParams(
            dimension_semantics=("parallel",)),
        cost_estimate=cost,
    )(x2, *params)

    out = out[:M, :out_dim]
    return out.reshape(*lead_shape, out_dim).astype(orig_dtype)


def mlp_reference(x, weights, biases):
    """Pure-JAX reference mirroring the PyTorch MLP forward."""
    h = x.reshape(-1, x.shape[-1]).astype(jnp.float32)
    for i, (w, b) in enumerate(zip(weights, biases)):
        h = h @ jnp.transpose(w).astype(jnp.float32) + b.astype(jnp.float32)
        if i < len(weights) - 1:
            h = jnp.maximum(h, 0.0)
    return h.reshape(*x.shape[:-1], weights[-1].shape[0])


if __name__ == "__main__":
    key = jax.random.PRNGKey(0)

    # MLP(in_dim=128, out_dim=64, num_layers=3):
    #   Linear(128,128) -> ReLU -> Linear(128,128) -> ReLU -> Linear(128,64)
    in_dim, out_dim, num_layers = 128, 64, 3
    batch = 64

    keys = jax.random.split(key, 2 * num_layers + 1)
    x = jax.random.normal(keys[0], (batch, in_dim), jnp.float32)

    dims = [(in_dim, in_dim)] * (num_layers - 1) + [(out_dim, in_dim)]
    weights, biases = [], []
    for l, (dout, din) in enumerate(dims):
        scale = 1.0 / np.sqrt(din)
        weights.append(scale * jax.random.normal(keys[1 + 2 * l], (dout, din), jnp.float32))
        biases.append(scale * jax.random.normal(keys[2 + 2 * l], (dout,), jnp.float32))

    out = mlp_forward(x, weights, biases)
    jax.block_until_ready(out)

    ref = mlp_reference(x, weights, biases)
    np.testing.assert_allclose(np.asarray(out), np.asarray(ref), rtol=2e-2, atol=1e-2)

    print("KERNEL_OK")
</pallas_src>

<mosaic_0001>
module attributes {stable_mosaic.version = 11 : i64} {
  func.func @_mlp_kernel(%arg0: i32, %arg1: memref<64x128xf32, #tpu.memory_space<vmem>>, %arg2: memref<128x128xf32, #tpu.memory_space<vmem>>, %arg3: memref<1x128xf32, #tpu.memory_space<vmem>>, %arg4: memref<128x128xf32, #tpu.memory_space<vmem>>, %arg5: memref<1x128xf32, #tpu.memory_space<vmem>>, %arg6: memref<128x128xf32, #tpu.memory_space<vmem>>, %arg7: memref<1x128xf32, #tpu.memory_space<vmem>>, %arg8: memref<64x128xf32, #tpu.memory_space<vmem>>) attributes {dimension_semantics = [#tpu.dimension_semantics<parallel>], iteration_bounds = array<i64: 1>, scalar_prefetch = 0 : i64, scratch_operands = 0 : i64, tpu.core_type = #tpu.core_type<tc>, window_params = [{transform_indices = @transform_0, window_bounds = array<i64: 64, 128>}, {pipeline_mode = #tpu.pipeline_mode<synchronous>, transform_indices = @transform_1, window_bounds = array<i64: 128, 128>}, {pipeline_mode = #tpu.pipeline_mode<synchronous>, transform_indices = @transform_2, window_bounds = array<i64: 1, 128>}, {pipeline_mode = #tpu.pipeline_mode<synchronous>, transform_indices = @transform_3, window_bounds = array<i64: 128, 128>}, {pipeline_mode = #tpu.pipeline_mode<synchronous>, transform_indices = @transform_4, window_bounds = array<i64: 1, 128>}, {pipeline_mode = #tpu.pipeline_mode<synchronous>, transform_indices = @transform_5, window_bounds = array<i64: 128, 128>}, {pipeline_mode = #tpu.pipeline_mode<synchronous>, transform_indices = @transform_6, window_bounds = array<i64: 1, 128>}, {transform_indices = @transform_7, window_bounds = array<i64: 64, 128>}]} {
    %c0 = arith.constant 0 : index
    %c0_0 = arith.constant 0 : index
    %0 = vector.load %arg1[%c0, %c0_0] : memref<64x128xf32, #tpu.memory_space<vmem>>, vector<64x128xf32>
    %c0_1 = arith.constant 0 : index
    %c0_2 = arith.constant 0 : index
    %1 = vector.load %arg2[%c0_1, %c0_2] : memref<128x128xf32, #tpu.memory_space<vmem>>, vector<128x128xf32>
    %c0_3 = arith.constant 0 : index
    %c0_4 = arith.constant 0 : index
    %2 = vector.load %arg3[%c0_3, %c0_4] : memref<1x128xf32, #tpu.memory_space<vmem>>, vector<1x128xf32>
    %cst = arith.constant dense<0.000000e+00> : vector<64x128xf32>
    %3 = tpu.matmul %0, %1, %cst {dimension_numbers = #tpu.dot_dimension_numbers<[1], [0], [0], [1], [0, 0, 1, 1], [], []>} : vector<64x128xf32>, vector<128x128xf32>, vector<64x128xf32> -> vector<64x128xf32>
    %4 = vector.broadcast %2 : vector<1x128xf32> to vector<64x128xf32>
    %5 = arith.addf %3, %4 : vector<64x128xf32>
    %cst_5 = arith.constant 0.000000e+00 : f32
    %6 = vector.broadcast %cst_5 : f32 to vector<64x128xf32>
    %7 = arith.maximumf %5, %6 : vector<64x128xf32>
    %c0_6 = arith.constant 0 : index
    %c0_7 = arith.constant 0 : index
    %8 = vector.load %arg4[%c0_6, %c0_7] : memref<128x128xf32, #tpu.memory_space<vmem>>, vector<128x128xf32>
    %c0_8 = arith.constant 0 : index
    %c0_9 = arith.constant 0 : index
    %9 = vector.load %arg5[%c0_8, %c0_9] : memref<1x128xf32, #tpu.memory_space<vmem>>, vector<1x128xf32>
    %cst_10 = arith.constant dense<0.000000e+00> : vector<64x128xf32>
    %10 = tpu.matmul %7, %8, %cst_10 {dimension_numbers = #tpu.dot_dimension_numbers<[1], [0], [0], [1], [0, 0, 1, 1], [], []>} : vector<64x128xf32>, vector<128x128xf32>, vector<64x128xf32> -> vector<64x128xf32>
    %11 = vector.broadcast %9 : vector<1x128xf32> to vector<64x128xf32>
    %12 = arith.addf %10, %11 : vector<64x128xf32>
    %cst_11 = arith.constant 0.000000e+00 : f32
    %13 = vector.broadcast %cst_11 : f32 to vector<64x128xf32>
    %14 = arith.maximumf %12, %13 : vector<64x128xf32>
    %c0_12 = arith.constant 0 : index
    %c0_13 = arith.constant 0 : index
    %15 = vector.load %arg6[%c0_12, %c0_13] : memref<128x128xf32, #tpu.memory_space<vmem>>, vector<128x128xf32>
    %c0_14 = arith.constant 0 : index
    %c0_15 = arith.constant 0 : index
    %16 = vector.load %arg7[%c0_14, %c0_15] : memref<1x128xf32, #tpu.memory_space<vmem>>, vector<1x128xf32>
    %cst_16 = arith.constant dense<0.000000e+00> : vector<64x128xf32>
    %17 = tpu.matmul %14, %15, %cst_16 {dimension_numbers = #tpu.dot_dimension_numbers<[1], [0], [0], [1], [0, 0, 1, 1], [], []>} : vector<64x128xf32>, vector<128x128xf32>, vector<64x128xf32> -> vector<64x128xf32>
    %18 = vector.broadcast %16 : vector<1x128xf32> to vector<64x128xf32>
    %19 = arith.addf %17, %18 : vector<64x128xf32>
    %c0_17 = arith.constant 0 : index
    %c0_18 = arith.constant 0 : index
    %20 = vector.load %arg8[%c0_17, %c0_18] : memref<64x128xf32, #tpu.memory_space<vmem>>, vector<64x128xf32>
    tpu.vector_store %arg8[%c0_17, %c0_18], %19 {strides = array<i32>} : memref<64x128xf32, #tpu.memory_space<vmem>>, vector<64x128xf32>,
    return
  }
  func.func @transform_0(%arg0: i32) -> (i32, i32) {
    %c0_i32 = arith.constant 0 : i32
    %c0_i32_0 = arith.constant 0 : i32
    return %arg0, %c0_i32 : i32, i32
  }
  func.func @transform_1(%arg0: i32) -> (i32, i32) {
    %c0_i32 = arith.constant 0 : i32
    %c0_i32_0 = arith.constant 0 : i32
    %c0_i32_1 = arith.constant 0 : i32
    return %c0_i32, %c0_i32_0 : i32, i32
  }
  func.func @transform_2(%arg0: i32) -> (i32, i32) {
    %c0_i32 = arith.constant 0 : i32
    %c0_i32_0 = arith.constant 0 : i32
    %c0_i32_1 = arith.constant 0 : i32
    return %c0_i32, %c0_i32_0 : i32, i32
  }
  func.func @transform_3(%arg0: i32) -> (i32, i32) {
    %c0_i32 = arith.constant 0 : i32
    %c0_i32_0 = arith.constant 0 : i32
    %c0_i32_1 = arith.constant 0 : i32
    return %c0_i32, %c0_i32_0 : i32, i32
  }
  func.func @transform_4(%arg0: i32) -> (i32, i32) {
    %c0_i32 = arith.constant 0 : i32
    %c0_i32_0 = arith.constant 0 : i32
    %c0_i32_1 = arith.constant 0 : i32
    return %c0_i32, %c0_i32_0 : i32, i32
  }
  func.func @transform_5(%arg0: i32) -> (i32, i32) {
    %c0_i32 = arith.constant 0 : i32
    %c0_i32_0 = arith.constant 0 : i32
    %c0_i32_1 = arith.constant 0 : i32
    return %c0_i32, %c0_i32_0 : i32, i32
  }
  func.func @transform_6(%arg0: i32) -> (i32, i32) {
    %c0_i32 = arith.constant 0 : i32
    %c0_i32_0 = arith.constant 0 : i32
    %c0_i32_1 = arith.constant 0 : i32
    return %c0_i32, %c0_i32_0 : i32, i32
  }
  func.func @transform_7(%arg0: i32) -> (i32, i32) {
    %c0_i32 = arith.constant 0 : i32
    %c0_i32_0 = arith.constant 0 : i32
    return %arg0, %c0_i32 : i32, i32
  }
}

</mosaic_0001>

<llo_original>
// kernel: mlp_forward.1
$region0: #{mlp_forward.1}
  #allocation0 [shape = 'u32[]', space=smem, size = 0x4, offset = 0x4, fixed_abs, tag = 'smem constant byte address 0x4 - core index']
  #allocation1 [shape = 'u32[144,128]{1,0:T(1,128)}', space=vmem, size = 0x12000, scoped, tag = 'internal scratch']
  %s0 = inlined_call_operand.vmem [shape: f32[64,128], index: 0, kind: input, shape index: {}]
  %s1 = inlined_call_operand.vmem [shape: f32[128,128], index: 1, kind: input, shape index: {}]
  %s2 = inlined_call_operand.vmem [shape: f32[1,128], index: 2, kind: input, shape index: {}]
  %s3 = inlined_call_operand.vmem [shape: f32[128,128], index: 3, kind: input, shape index: {}]
  %s4 = inlined_call_operand.vmem [shape: f32[1,128], index: 4, kind: input, shape index: {}]
  %s5 = inlined_call_operand.vmem [shape: f32[128,128], index: 5, kind: input, shape index: {}]
  %s6 = inlined_call_operand.vmem [shape: f32[1,128], index: 6, kind: input, shape index: {}]
  %s7 = inlined_call_operand.hbm [shape: f32[64,128], index: 7, kind: output, shape index: {}]
  %s8 = sld [smem:[#allocation0]]
  $region38: #{mlp_forward.1} parent=0
    _
  %s10 = ssub.s32 1, %s8
  %s11 = scalar_select 0, %s10, %s8
  $region1: #{mlp_forward.1} parent=0
    #allocation2 [shape = 'u8[32768]{0}', space=vmem, size = 0x8000, scoped, tag = 'output window, operand 0, single buffered']
    #allocation3 [shape = 's32[1]{0}', space=sflag, size = 0x4, scoped, tag = 'scoped memory for mlp_forward.1']
    %12 = vsyncpa [#allocation3], 0
    // Predicated region
    $region2: #{mlp_forward.1} parent=1 // pred_check
      _
    $region3: #{mlp_forward.1} parent=1 // pred_check_branch
      %14 = sbr.rel (0) target = $region5
    $region4: #{mlp_forward.1} parent=1 // pred_region
      _
    $region5: #{mlp_forward.1} parent=1 // pred_fallthru
      _
    // Predicated region
    $region6: #{mlp_forward.1} parent=1 // pred_check
      _
    $region7: #{mlp_forward.1} parent=1 // pred_check_branch
      %16 = sbr.rel (0) target = $region9
    $region8: #{mlp_forward.1} parent=1 // pred_region
      _
    $region9: #{mlp_forward.1} parent=1 // pred_fallthru
      _
    // Predicated region
    $region10: #{mlp_forward.1} parent=1 // pred_check
      _
    $region11: #{mlp_forward.1} parent=1 // pred_check_branch
      %18 = sbr.rel (0) target = $region13
    $region12: #{mlp_forward.1} parent=1 // pred_region
      _
    $region13: #{mlp_forward.1} parent=1 // pred_fallthru
      _
    // Predicated region
    $region14: #{mlp_forward.1} parent=1 // pred_check
      _
    $region15: #{mlp_forward.1} parent=1 // pred_check_branch
      %20 = sbr.rel (0) target = $region17
    $region16: #{mlp_forward.1} parent=1 // pred_region
      _
    $region17: #{mlp_forward.1} parent=1 // pred_fallthru
      _
    // Predicated region
    $region18: #{mlp_forward.1} parent=1 // pred_check
      _
    $region19: #{mlp_forward.1} parent=1 // pred_check_branch
      %22 = sbr.rel (0) target = $region21
    $region20: #{mlp_forward.1} parent=1 // pred_region
      _
    $region21: #{mlp_forward.1} parent=1 // pred_fallthru
      _
    // Predicated region
    $region22: #{mlp_forward.1} parent=1 // pred_check
      _
    $region23: #{mlp_forward.1} parent=1 // pred_check_branch
      %24 = sbr.rel (0) target = $region25
    $region24: #{mlp_forward.1} parent=1 // pred_region
      _
    $region25: #{mlp_forward.1} parent=1 // pred_fallthru
      _
    // Predicated region
    $region26: #{mlp_forward.1} parent=1 // pred_check
      _
    $region27: #{mlp_forward.1} parent=1 // pred_check_branch
      %26 = sbr.rel (0) target = $region29
    $region28: #{mlp_forward.1} parent=1 // pred_region
      _
    $region29: #{mlp_forward.1} parent=1 // pred_fallthru
      _
    %v27 = vld [vmem:[%s0] sm:$0xff]
    %v28 = vld [vmem:[%s0 + $0x8] sm:$0xff]
    %v29 = vld [vmem:[%s0 + $0x10] sm:$0xff]
    %v30 = vld [vmem:[%s0 + $0x18] sm:$0xff]
    %v31 = vld [vmem:[%s0 + $0x20] sm:$0xff]
    %v32 = vld [vmem:[%s0 + $0x28] sm:$0xff]
    %v33 = vld [vmem:[%s0 + $0x30] sm:$0xff]
    %v34 = vld [vmem:[%s0 + $0x38] sm:$0xff]
    %v35 = vld [vmem:[%s1] sm:$0xff]
    %v36 = vld [vmem:[%s1 + $0x8] sm:$0xff]
    %v37 = vld [vmem:[%s1 + $0x10] sm:$0xff]
    %v38 = vld [vmem:[%s1 + $0x18] sm:$0xff]
    %v39 = vld [vmem:[%s1 + $0x20] sm:$0xff]
    %v40 = vld [vmem:[%s1 + $0x28] sm:$0xff]
    %v41 = vld [vmem:[%s1 + $0x30] sm:$0xff]
    %v42 = vld [vmem:[%s1 + $0x38] sm:$0xff]
    %v43 = vld [vmem:[%s1 + $0x40] sm:$0xff]
    %v44 = vld [vmem:[%s1 + $0x48] sm:$0xff]
    %v45 = vld [vmem:[%s1 + $0x50] sm:$0xff]
    %v46 = vld [vmem:[%s1 + $0x58] sm:$0xff]
    %v47 = vld [vmem:[%s1 + $0x60] sm:$0xff]
    %v48 = vld [vmem:[%s1 + $0x68] sm:$0xff]
    %v49 = vld [vmem:[%s1 + $0x70] sm:$0xff]
    %v50 = vld [vmem:[%s1 + $0x78] sm:$0xff]
    %v51 = vld [vmem:[%s2] sm:$0x1]
    %v53 = vlaneseq
    %v54 = vshrl.u32 %v53, 7
    %v55 = vsub.s32 0, %v54
    %v56 = vrot.slane %v51, %v55
    %58 = vmatprep.subr.mxu0 0.0
    %59 = vmatpush1.msra.mxu0 %v50
    %60 = vmatprep.subr.mxu0 0.0
    %61 = vmatpush1.msra.mxu0 %v49
    %62 = vmatprep.subr.mxu0 0.0
    %63 = vmatpush1.msra.mxu0 %v48
    %64 = vmatprep.subr.mxu0 0.0
    %65 = vmatpush1.msra.mxu0 %v47
    %66 = vmatprep.subr.mxu0 0.0
    %67 = vmatpush1.msra.mxu0 %v46
    %68 = vmatprep.subr.mxu0 0.0
    %69 = vmatpush1.msra.mxu0 %v45
    %70 = vmatprep.subr.mxu0 0.0
    %71 = vmatpush1.msra.mxu0 %v44
    %72 = vmatprep.subr.mxu0 0.0
    %73 = vmatpush1.msra.mxu0 %v43
    %74 = vmatprep.subr.mxu0 0.0
    %75 = vmatpush1.msra.mxu0 %v42
    %76 = vmatprep.subr.mxu0 0.0
    %77 = vmatpush1.msra.mxu0 %v41
    %78 = vmatprep.subr.mxu0 0.0
    %79 = vmatpush1.msra.mxu0 %v40
    %80 = vmatprep.subr.mxu0 0.0
    %81 = vmatpush1.msra.mxu0 %v39
    %82 = vmatprep.subr.mxu0 0.0
    %83 = vmatpush1.msra.mxu0 %v38
    %84 = vmatprep.subr.mxu0 0.0
    %85 = vmatpush1.msra.mxu0 %v37
    %86 = vmatprep.subr.mxu0 0.0
    %87 = vmatpush1.msra.mxu0 %v36
    %88 = vmatprep.subr.mxu0 0.0
    %89 = vmatpush1.msra.mxu0 %v35
    %90 = vmatprep.subr.mxu0 0.0
    %91 = vmatpush2.msra.mxu0 0.0
    %92 = vmatprep.subr.mxu0 0.0
    %93 = vmatpush2.msra.mxu0 0.0
    %94 = vmatprep.subr.mxu0 0.0
    %95 = vmatpush2.msra.mxu0 0.0
    %96 = vmatprep.subr.mxu0 0.0
    %97 = vmatpush2.msra.mxu0 0.0
    %98 = vmatprep.subr.mxu0 0.0
    %99 = vmatpush2.msra.mxu0 0.0
    %100 = vmatprep.subr.mxu0 0.0
    %101 = vmatpush2.msra.mxu0 0.0
    %102 = vmatprep.subr.mxu0 0.0
    %103 = vmatpush2.msra.mxu0 0.0
    %104 = vmatprep.subr.mxu0 0.0
    %105 = vmatpush2.msra.mxu0 0.0
    %106 = vmatprep.subr.mxu0 0.0
    %107 = vmatpush2.msra.mxu0 0.0
    %108 = vmatprep.subr.mxu0 0.0
    %109 = vmatpush2.msra.mxu0 0.0
    %110 = vmatprep.subr.mxu0 0.0
    %111 = vmatpush2.msra.mxu0 0.0
    %112 = vmatprep.subr.mxu0 0.0
    %113 = vmatpush2.msra.mxu0 0.0
    %114 = vmatprep.subr.mxu0 0.0
    %115 = vmatpush2.msra.mxu0 0.0
    %116 = vmatprep.subr.mxu0 0.0
    %117 = vmatpush2.msra.mxu0 0.0
    %118 = vmatprep.subr.mxu0 0.0
    %119 = vmatpush2.msra.mxu0 0.0
    %120 = vmatprep.subr.mxu0 0.0
    %121 = vmatpush2.msra.mxu0 0.0
    %122 = vmatprep.mubr.f32.mxu0 0.0
    %123 = vmatmul.mubr.f32.gmra.mxu0 %v27
    %v124 = vpop.f32.mrf.mxu0
    %v125 = vadd.f32 %v56, %v124
    %v126 = vpop.f32.mrf.mxu0
    %127 = vmatprep.mubr.f32.mxu0 0.0
    %128 = vmatmul.mubr.f32.gmra.mxu0 %v28
    %v129 = vpop.f32.mrf.mxu0
    %v130 = vadd.f32 %v56, %v129
    %v131 = vpop.f32.mrf.mxu0
    %132 = vmatprep.mubr.f32.mxu0 0.0
    %133 = vmatmul.mubr.f32.gmra.mxu0 %v29
    %v134 = vpop.f32.mrf.mxu0
    %v135 = vadd.f32 %v56, %v134
    %v136 = vpop.f32.mrf.mxu0
    %137 = vmatprep.mubr.f32.mxu0 0.0
    %138 = vmatmul.mubr.f32.gmra.mxu0 %v30
    %v139 = vpop.f32.mrf.mxu0
    %v140 = vadd.f32 %v56, %v139
    %v141 = vpop.f32.mrf.mxu0
    %142 = vmatprep.mubr.f32.mxu0 0.0
    %143 = vmatmul.mubr.f32.gmra.mxu0 %v31
    %v144 = vpop.f32.mrf.mxu0
    %v145 = vadd.f32 %v56, %v144
    %v146 = vpop.f32.mrf.mxu0
    %147 = vmatprep.mubr.f32.mxu0 0.0
    %148 = vmatmul.mubr.f32.gmra.mxu0 %v32
    %v149 = vpop.f32.mrf.mxu0
    %v150 = vadd.f32 %v56, %v149
    %v151 = vpop.f32.mrf.mxu0
    %152 = vmatprep.mubr.f32.mxu0 0.0
    %153 = vmatmul.mubr.f32.gmra.mxu0 %v33
    %v154 = vpop.f32.mrf.mxu0
    %v155 = vadd.f32 %v56, %v154
    %v156 = vpop.f32.mrf.mxu0
    %157 = vmatprep.mubr.f32.mxu0 0.0
    %158 = vmatmul.mubr.f32.gmra.mxu0 %v34
    %v159 = vpop.f32.mrf.mxu0
    %v160 = vadd.f32 %v56, %v159
    %v161 = vpop.f32.mrf.mxu0
    %162 = vdwg.mxu0
    %v163 = vmax.f32 %v125, 0.0
    %v164 = vmax.f32 %v130, 0.0
    %v165 = vmax.f32 %v135, 0.0
    %v166 = vmax.f32 %v140, 0.0
    %v167 = vmax.f32 %v145, 0.0
    %v168 = vmax.f32 %v150, 0.0
    %v169 = vmax.f32 %v155, 0.0
    %v170 = vmax.f32 %v160, 0.0
    %v171 = vld [vmem:[%s3] sm:$0xff]
    %v172 = vld [vmem:[%s3 + $0x8] sm:$0xff]
    %v173 = vld [vmem:[%s3 + $0x10] sm:$0xff]
    %v174 = vld [vmem:[%s3 + $0x18] sm:$0xff]
    %v175 = vld [vmem:[%s3 + $0x20] sm:$0xff]
    %v176 = vld [vmem:[%s3 + $0x28] sm:$0xff]
    %v177 = vld [vmem:[%s3 + $0x30] sm:$0xff]
    %v178 = vld [vmem:[%s3 + $0x38] sm:$0xff]
    %v179 = vld [vmem:[%s3 + $0x40] sm:$0xff]
    %v180 = vld [vmem:[%s3 + $0x48] sm:$0xff]
    %v181 = vld [vmem:[%s3 + $0x50] sm:$0xff]
    %v182 = vld [vmem:[%s3 + $0x58] sm:$0xff]
    %v183 = vld [vmem:[%s3 + $0x60] sm:$0xff]
    %v184 = vld [vmem:[%s3 + $0x68] sm:$0xff]
    %v185 = vld [vmem:[%s3 + $0x70] sm:$0xff]
    %v186 = vld [vmem:[%s3 + $0x78] sm:$0xff]
    %v187 = vld [vmem:[%s4] sm:$0x1]
    %v189 = vlaneseq
    %v190 = vshrl.u32 %v189, 7
    %v191 = vsub.s32 0, %v190
    %v192 = vrot.slane %v187, %v191
    %194 = vmatprep.subr.mxu0 0.0
    %195 = vmatpush1.msra.mxu0 %v186
    %196 = vmatprep.subr.mxu0 0.0
    %197 = vmatpush1.msra.mxu0 %v185
    %198 = vmatprep.subr.mxu0 0.0
    %199 = vmatpush1.msra.mxu0 %v184
    %200 = vmatprep.subr.mxu0 0.0
    %201 = vmatpush1.msra.mxu0 %v183
    %202 = vmatprep.subr.mxu0 0.0
    %203 = vmatpush1.msra.mxu0 %v182
    %204 = vmatprep.subr.mxu0 0.0
    %205 = vmatpush1.msra.mxu0 %v181
    %206 = vmatprep.subr.mxu0 0.0
    %207 = vmatpush1.msra.mxu0 %v180
    %208 = vmatprep.subr.mxu0 0.0
    %209 = vmatpush1.msra.mxu0 %v179
    %210 = vmatprep.subr.mxu0 0.0
    %211 = vmatpush1.msra.mxu0 %v178
    %212 = vmatprep.subr.mxu0 0.0
    %213 = vmatpush1.msra.mxu0 %v177
    %214 = vmatprep.subr.mxu0 0.0
    %215 = vmatpush1.msra.mxu0 %v176
    %216 = vmatprep.subr.mxu0 0.0
    %217 = vmatpush1.msra.mxu0 %v175
    %218 = vmatprep.subr.mxu0 0.0
    %219 = vmatpush1.msra.mxu0 %v174
    %220 = vmatprep.subr.mxu0 0.0
    %221 = vmatpush1.msra.mxu0 %v173
    %222 = vmatprep.subr.mxu0 0.0
    %223 = vmatpush1.msra.mxu0 %v172
    %224 = vmatprep.subr.mxu0 0.0
    %225 = vmatpush1.msra.mxu0 %v171
    %226 = vmatprep.subr.mxu0 0.0
    %227 = vmatpush2.msra.mxu0 0.0
    %228 = vmatprep.subr.mxu0 0.0
    %229 = vmatpush2.msra.mxu0 0.0
    %230 = vmatprep.subr.mxu0 0.0
    %231 = vmatpush2.msra.mxu0 0.0
    %232 = vmatprep.subr.mxu0 0.0
    %233 = vmatpush2.msra.mxu0 0.0
    %234 = vmatprep.subr.mxu0 0.0
    %235 = vmatpush2.msra.mxu0 0.0
    %236 = vmatprep.subr.mxu0 0.0
    %237 = vmatpush2.msra.mxu0 0.0
    %238 = vmatprep.subr.mxu0 0.0
    %239 = vmatpush2.msra.mxu0 0.0
    %240 = vmatprep.subr.mxu0 0.0
    %241 = vmatpush2.msra.mxu0 0.0
    %242 = vmatprep.subr.mxu0 0.0
    %243 = vmatpush2.msra.mxu0 0.0
    %244 = vmatprep.subr.mxu0 0.0
    %245 = vmatpush2.msra.mxu0 0.0
    %246 = vmatprep.subr.mxu0 0.0
    %247 = vmatpush2.msra.mxu0 0.0
    %248 = vmatprep.subr.mxu0 0.0
    %249 = vmatpush2.msra.mxu0 0.0
    %250 = vmatprep.subr.mxu0 0.0
    %251 = vmatpush2.msra.mxu0 0.0
    %252 = vmatprep.subr.mxu0 0.0
    %253 = vmatpush2.msra.mxu0 0.0
    %254 = vmatprep.subr.mxu0 0.0
    %255 = vmatpush2.msra.mxu0 0.0
    %256 = vmatprep.subr.mxu0 0.0
    %257 = vmatpush2.msra.mxu0 0.0
    %258 = vmatprep.mubr.f32.mxu0 0.0
    %259 = vmatmul.mubr.f32.gmra.mxu0 %v163
    %v260 = vpop.f32.mrf.mxu0
    %v261 = vadd.f32 %v192, %v260
    %v262 = vpop.f32.mrf.mxu0
    %263 = vmatprep.mubr.f32.mxu0 0.0
    %264 = vmatmul.mubr.f32.gmra.mxu0 %v164
    %v265 = vpop.f32.mrf.mxu0
    %v266 = vadd.f32 %v192, %v265
    %v267 = vpop.f32.mrf.mxu0
    %268 = vmatprep.mubr.f32.mxu0 0.0
    %269 = vmatmul.mubr.f32.gmra.mxu0 %v165
    %v270 = vpop.f32.mrf.mxu0
    %v271 = vadd.f32 %v192, %v270
    %v272 = vpop.f32.mrf.mxu0
    %273 = vmatprep.mubr.f32.mxu0 0.0
    %274 = vmatmul.mubr.f32.gmra.mxu0 %v166
    %v275 = vpop.f32.mrf.mxu0
    %v276 = vadd.f32 %v192, %v275
    %v277 = vpop.f32.mrf.mxu0
    %278 = vmatprep.mubr.f32.mxu0 0.0
    %279 = vmatmul.mubr.f32.gmra.mxu0 %v167
    %v280 = vpop.f32.mrf.mxu0
    %v281 = vadd.f32 %v192, %v280
    %v282 = vpop.f32.mrf.mxu0
    %283 = vmatprep.mubr.f32.mxu0 0.0
    %284 = vmatmul.mubr.f32.gmra.mxu0 %v168
    %v285 = vpop.f32.mrf.mxu0
    %v286 = vadd.f32 %v192, %v285
    %v287 = vpop.f32.mrf.mxu0
    %288 = vmatprep.mubr.f32.mxu0 0.0
    %289 = vmatmul.mubr.f32.gmra.mxu0 %v169
    %v290 = vpop.f32.mrf.mxu0
    %v291 = vadd.f32 %v192, %v290
    %v292 = vpop.f32.mrf.mxu0
    %293 = vmatprep.mubr.f32.mxu0 0.0
    %294 = vmatmul.mubr.f32.gmra.mxu0 %v170
    %v295 = vpop.f32.mrf.mxu0
    %v296 = vadd.f32 %v192, %v295
    %v297 = vpop.f32.mrf.mxu0
    %298 = vdwg.mxu0
    %v299 = vmax.f32 %v261, 0.0
    %v300 = vmax.f32 %v266, 0.0
    %v301 = vmax.f32 %v271, 0.0
    %v302 = vmax.f32 %v276, 0.0
    %v303 = vmax.f32 %v281, 0.0
    %v304 = vmax.f32 %v286, 0.0
    %v305 = vmax.f32 %v291, 0.0
    %v306 = vmax.f32 %v296, 0.0
    %v307 = vld [vmem:[%s5] sm:$0xff]
    %v308 = vld [vmem:[%s5 + $0x8] sm:$0xff]
    %v309 = vld [vmem:[%s5 + $0x10] sm:$0xff]
    %v310 = vld [vmem:[%s5 + $0x18] sm:$0xff]
    %v311 = vld [vmem:[%s5 + $0x20] sm:$0xff]
    %v312 = vld [vmem:[%s5 + $0x28] sm:$0xff]
    %v313 = vld [vmem:[%s5 + $0x30] sm:$0xff]
    %v314 = vld [vmem:[%s5 + $0x38] sm:$0xff]
    %v315 = vld [vmem:[%s5 + $0x40] sm:$0xff]
    %v316 = vld [vmem:[%s5 + $0x48] sm:$0xff]
    %v317 = vld [vmem:[%s5 + $0x50] sm:$0xff]
    %v318 = vld [vmem:[%s5 + $0x58] sm:$0xff]
    %v319 = vld [vmem:[%s5 + $0x60] sm:$0xff]
    %v320 = vld [vmem:[%s5 + $0x68] sm:$0xff]
    %v321 = vld [vmem:[%s5 + $0x70] sm:$0xff]
    %v322 = vld [vmem:[%s5 + $0x78] sm:$0xff]
    %v323 = vld [vmem:[%s6] sm:$0x1]
    %v325 = vlaneseq
    %v326 = vshrl.u32 %v325, 7
    %v327 = vsub.s32 0, %v326
    %v328 = vrot.slane %v323, %v327
    %330 = vmatprep.subr.mxu0 0.0
    %331 = vmatpush1.msra.mxu0 %v322
    %332 = vmatprep.subr.mxu0 0.0
    %333 = vmatpush1.msra.mxu0 %v321
    %334 = vmatprep.subr.mxu0 0.0
    %335 = vmatpush1.msra.mxu0 %v320
    %336 = vmatprep.subr.mxu0 0.0
    %337 = vmatpush1.msra.mxu0 %v319
    %338 = vmatprep.subr.mxu0 0.0
    %339 = vmatpush1.msra.mxu0 %v318
    %340 = vmatprep.subr.mxu0 0.0
    %341 = vmatpush1.msra.mxu0 %v317
    %342 = vmatprep.subr.mxu0 0.0
    %343 = vmatpush1.msra.mxu0 %v316
    %344 = vmatprep.subr.mxu0 0.0
    %345 = vmatpush1.msra.mxu0 %v315
    %346 = vmatprep.subr.mxu0 0.0
    %347 = vmatpush1.msra.mxu0 %v314
    %348 = vmatprep.subr.mxu0 0.0
    %349 = vmatpush1.msra.mxu0 %v313
    %350 = vmatprep.subr.mxu0 0.0
    %351 = vmatpush1.msra.mxu0 %v312
    %352 = vmatprep.subr.mxu0 0.0
    %353 = vmatpush1.msra.mxu0 %v311
    %354 = vmatprep.subr.mxu0 0.0
    %355 = vmatpush1.msra.mxu0 %v310
    %356 = vmatprep.subr.mxu0 0.0
    %357 = vmatpush1.msra.mxu0 %v309
    %358 = vmatprep.subr.mxu0 0.0
    %359 = vmatpush1.msra.mxu0 %v308
    %360 = vmatprep.subr.mxu0 0.0
    %361 = vmatpush1.msra.mxu0 %v307
    %362 = vmatprep.subr.mxu0 0.0
    %363 = vmatpush2.msra.mxu0 0.0
    %364 = vmatprep.subr.mxu0 0.0
    %365 = vmatpush2.msra.mxu0 0.0
    %366 = vmatprep.subr.mxu0 0.0
    %367 = vmatpush2.msra.mxu0 0.0
    %368 = vmatprep.subr.mxu0 0.0
    %369 = vmatpush2.msra.mxu0 0.0
    %370 = vmatprep.subr.mxu0 0.0
    %371 = vmatpush2.msra.mxu0 0.0
    %372 = vmatprep.subr.mxu0 0.0
    %373 = vmatpush2.msra.mxu0 0.0
    %374 = vmatprep.subr.mxu0 0.0
    %375 = vmatpush2.msra.mxu0 0.0
    %376 = vmatprep.subr.mxu0 0.0
    %377 = vmatpush2.msra.mxu0 0.0
    %378 = vmatprep.subr.mxu0 0.0
    %379 = vmatpush2.msra.mxu0 0.0
    %380 = vmatprep.subr.mxu0 0.0
    %381 = vmatpush2.msra.mxu0 0.0
    %382 = vmatprep.subr.mxu0 0.0
    %383 = vmatpush2.msra.mxu0 0.0
    %384 = vmatprep.subr.mxu0 0.0
    %385 = vmatpush2.msra.mxu0 0.0
    %386 = vmatprep.subr.mxu0 0.0
    %387 = vmatpush2.msra.mxu0 0.0
    %388 = vmatprep.subr.mxu0 0.0
    %389 = vmatpush2.msra.mxu0 0.0
    %390 = vmatprep.subr.mxu0 0.0
    %391 = vmatpush2.msra.mxu0 0.0
    %392 = vmatprep.subr.mxu0 0.0
    %393 = vmatpush2.msra.mxu0 0.0
    %394 = vmatprep.mubr.f32.mxu0 0.0
    %395 = vmatmul.mubr.f32.gmra.mxu0 %v299
    %v396 = vpop.f32.mrf.mxu0
    %v397 = vadd.f32 %v328, %v396
    %v398 = vpop.f32.mrf.mxu0
    %399 = vmatprep.mubr.f32.mxu0 0.0
    %400 = vmatmul.mubr.f32.gmra.mxu0 %v300
    %v401 = vpop.f32.mrf.mxu0
    %v402 = vadd.f32 %v328, %v401
    %v403 = vpop.f32.mrf.mxu0
    %404 = vmatprep.mubr.f32.mxu0 0.0
    %405 = vmatmul.mubr.f32.gmra.mxu0 %v301
    %v406 = vpop.f32.mrf.mxu0
    %v407 = vadd.f32 %v328, %v406
    %v408 = vpop.f32.mrf.mxu0
    %409 = vmatprep.mubr.f32.mxu0 0.0
    %410 = vmatmul.mubr.f32.gmra.mxu0 %v302
    %v411 = vpop.f32.mrf.mxu0
    %v412 = vadd.f32 %v328, %v411
    %v413 = vpop.f32.mrf.mxu0
    %414 = vmatprep.mubr.f32.mxu0 0.0
    %415 = vmatmul.mubr.f32.gmra.mxu0 %v303
    %v416 = vpop.f32.mrf.mxu0
    %v417 = vadd.f32 %v328, %v416
    %v418 = vpop.f32.mrf.mxu0
    %419 = vmatprep.mubr.f32.mxu0 0.0
    %420 = vmatmul.mubr.f32.gmra.mxu0 %v304
    %v421 = vpop.f32.mrf.mxu0
    %v422 = vadd.f32 %v328, %v421
    %v423 = vpop.f32.mrf.mxu0
    %424 = vmatprep.mubr.f32.mxu0 0.0
    %425 = vmatmul.mubr.f32.gmra.mxu0 %v305
    %v426 = vpop.f32.mrf.mxu0
    %v427 = vadd.f32 %v328, %v426
    %v428 = vpop.f32.mrf.mxu0
    %429 = vmatprep.mubr.f32.mxu0 0.0
    %430 = vmatmul.mubr.f32.gmra.mxu0 %v306
    %v431 = vpop.f32.mrf.mxu0
    %v432 = vadd.f32 %v328, %v431
    %v433 = vpop.f32.mrf.mxu0
    %434 = vdwg.mxu0
    %435 = vst [vmem:[#allocation2] sm:$0xff] %v397
    %436 = vst [vmem:[#allocation2 + $0x8] sm:$0xff] %v402
    %437 = vst [vmem:[#allocation2 + $0x10] sm:$0xff] %v407
    %438 = vst [vmem:[#allocation2 + $0x18] sm:$0xff] %v412
    %439 = vst [vmem:[#allocation2 + $0x20] sm:$0xff] %v417
    %440 = vst [vmem:[#allocation2 + $0x28] sm:$0xff] %v422
    %441 = vst [vmem:[#allocation2 + $0x30] sm:$0xff] %v427
    %442 = vst [vmem:[#allocation2 + $0x38] sm:$0xff] %v432
    // Predicated region
    $region30: #{mlp_forward.1} parent=1 // pred_check
      _
    $region31: #{mlp_forward.1} parent=1 // pred_check_branch
      %444 = sbr.rel (0) target = $region33
    $region32: #{mlp_forward.1} parent=1 // pred_region
      %s446 = ssub.s32 1024, 1024
      %447 = vsyncadd [#allocation3], %s446
      %s448 = sshll.u32 [#allocation2], 4
      %s449 = int_to_ptr.vmem [resolvable:$true] %s448
      %454 = dma.vmem_to_hbm [thread:$0]  %s449, 1024, %s7, [#allocation3], 128, 128, 8
    $region33: #{mlp_forward.1} parent=1 // pred_fallthru
      _
    // Predicated region
    $region34: #{mlp_forward.1} parent=1 // pred_check
      _
    $region35: #{mlp_forward.1} parent=1 // pred_check_branch
      %456 = sbr.rel (0) target = $region37
    $region36: #{mlp_forward.1} parent=1 // pred_region
      %457 = dma.done [#allocation3], 1024
    $region37: #{mlp_forward.1} parent=1 // pred_fallthru
      _
    %458 = vsyncpa [#allocation3], 1

</llo_original>
